<compile_context>
chip_gen: v7x
topology: tpu7x:2x2x1
jax: 0.10.0
libtpu: 0.0.40
codegen_flags: <defaults>
</compile_context>

<pallas_src>
import functools

import jax
import jax.numpy as jnp
import numpy as np
from jax.experimental import pallas as pl
from jax.experimental.pallas import tpu as pltpu

# hidden sizes fixed by the PyTorch module
H1, H2, H3 = 512, 256, 64


def _leaky_relu(x, slope=0.2):
    # slope < 1  =>  max(x, slope*x) == LeakyReLU(x, slope)
    return jnp.maximum(x, slope * x)


def disc_kernel(x_ref, m_ref, w_hbm, o_ref, wbuf, sem, *, D):
    """Whole MLP forward in a single invocation (no grid).

    x_ref : (B, D)   f32  VMEM  flattened image
    m_ref : (8, 512) f32  VMEM  packed biases + w4 row (see pack_params)
    w_hbm : (R, 512) bf16 HBM   packed [w1 ; w2^T ; w3^T]
    o_ref : (B, 1)   f32  VMEM  logits
    wbuf  : (R, 512) bf16 VMEM  weight staging buffer
    sem   : DMA semaphores (3,) one per weight chunk
    """
    r1 = D           # end of w1   rows: (D,   512)
    r2 = r1 + H2     # end of w2^T rows: (256, 512)
    r3 = r2 + H3     # end of w3^T rows: (64,  512) [cols 0:256 used]

    # Kick off all weight DMAs immediately; wait lazily per layer so later
    # chunks overlap earlier-layer compute.
    cp1 = pltpu.make_async_copy(w_hbm.at[0:r1, :], wbuf.at[0:r1, :], sem.at[0])
    cp2 = pltpu.make_async_copy(w_hbm.at[r1:r2, :], wbuf.at[r1:r2, :], sem.at[1])
    cp3 = pltpu.make_async_copy(w_hbm.at[r2:r3, :], wbuf.at[r2:r3, :], sem.at[2])
    cp1.start()
    cp2.start()
    cp3.start()

    x = x_ref[...]                       # (B, D) f32
    m = m_ref[...]                       # (8, 512) f32
    b1 = m[0:1, :]                       # (1, 512)
    b2 = m[1:2, 0:H2]                    # (1, 256)
    b3 = m[2:3, 0:H3]                    # (1, 64)
    b4 = m[3:4, 0:1]                     # (1, 1)
    w4r = m[4:5, 0:H3]                   # (1, 64) == w4[:, 0]

    nt = (((1,), (1,)), ((), ()))        # contract rhs dim 1 (rhs stored transposed)

    # layer 1: (B, D) @ (D, 512)
    cp1.wait()
    w1 = wbuf[0:r1, :].astype(jnp.float32)
    h = jnp.dot(x, w1, preferred_element_type=jnp.float32) + b1
    h = _leaky_relu(h)

    # layer 2: (B, 512) @ (512, 256), stored as w2^T (256, 512)
    cp2.wait()
    w2t = wbuf[r1:r2, :].astype(jnp.float32)
    h = jax.lax.dot_general(h, w2t, nt, preferred_element_type=jnp.float32) + b2
    h = _leaky_relu(h)

    # layer 3: (B, 256) @ (256, 64), stored as w3^T (64, 256)
    cp3.wait()
    w3t = wbuf[r2:r3, 0:H2].astype(jnp.float32)
    h = jax.lax.dot_general(h, w3t, nt, preferred_element_type=jnp.float32) + b3
    h = _leaky_relu(h)                   # (B, 64)

    # layer 4: degenerate N=1 matmul -> VPU mul + cross-lane reduce (off MXU)
    out = jnp.sum(h * w4r, axis=-1, keepdims=True) + b4
    o_ref[...] = out.astype(o_ref.dtype)


def init_params(key, in_features):
    """PyTorch nn.Linear-style uniform(-1/sqrt(fan_in), 1/sqrt(fan_in)) init."""
    dims = [in_features, H1, H2, H3, 1]
    params = []
    for i in range(4):
        fan_in, fan_out = dims[i], dims[i + 1]
        key, kw, kb = jax.random.split(key, 3)
        bound = 1.0 / np.sqrt(fan_in)
        # stored as (in, out) so the math is x @ W + b
        w = jax.random.uniform(kw, (fan_in, fan_out), jnp.float32, -bound, bound)
        b = jax.random.uniform(kb, (1, fan_out), jnp.float32, -bound, bound)
        params.append((w, b))
    return params


def pack_params(params):
    """Pack w1/w2/w3 into one dense bf16 buffer; biases + w4 into one f32 buffer."""
    (w1, b1), (w2, b2), (w3, b3), (w4, b4) = params
    D = w1.shape[0]
    assert D % 16 == 0, "flattened input dim must be sublane aligned"
    R = D + H2 + H3
    W = jnp.zeros((R, H1), jnp.bfloat16)
    W = W.at[0:D, :].set(w1.astype(jnp.bfloat16))                # (D, 512)
    W = W.at[D:D + H2, :].set(w2.T.astype(jnp.bfloat16))         # (256, 512)
    W = W.at[D + H2:R, 0:H2].set(w3.T.astype(jnp.bfloat16))      # (64, 256)
    M = jnp.zeros((8, H1), jnp.float32)
    M = M.at[0, :].set(b1.reshape(-1))
    M = M.at[1, 0:H2].set(b2.reshape(-1))
    M = M.at[2, 0:H3].set(b3.reshape(-1))
    M = M.at[3, 0].set(b4.reshape(-1)[0])
    M = M.at[4, 0:H3].set(w4.reshape(-1))                        # w4 column as a row
    return W, M


def discriminator_forward(x_img, packed_w, packed_m):
    """x_img: (B, C, H, W) f32. Returns (B, 1) f32 logits."""
    B = x_img.shape[0]
    x = x_img.reshape(B, -1).astype(jnp.float32)   # nn.Flatten on NCHW
    D = x.shape[1]
    R = packed_w.shape[0]
    kernel = functools.partial(disc_kernel, D=D)
    return pl.pallas_call(
        kernel,
        out_shape=jax.ShapeDtypeStruct((B, 1), jnp.float32),
        in_specs=[
            pl.BlockSpec(memory_space=pltpu.VMEM),   # x (whole array in VMEM)
            pl.BlockSpec(memory_space=pltpu.VMEM),   # packed biases / w4
            pl.BlockSpec(memory_space=pl.ANY),       # packed weights stay in HBM
        ],
        out_specs=pl.BlockSpec(memory_space=pltpu.VMEM),
        scratch_shapes=[
            pltpu.VMEM((R, H1), jnp.bfloat16),       # weight staging buffer
            pltpu.SemaphoreType.DMA((3,)),
        ],
    )(x, packed_m, packed_w)


def reference_forward(x_img, params, quantize_weights=False):
    """Pure-JAX reference; quantize_weights mimics the kernel's bf16 weight storage."""
    h = x_img.reshape(x_img.shape[0], -1)
    for i, (w, b) in enumerate(params):
        if quantize_weights and i < 3:
            w = w.astype(jnp.bfloat16).astype(jnp.float32)
        h = h @ w + b
        if i < 3:
            h = jnp.maximum(h, 0.2 * h)
    return h


if __name__ == "__main__":
    key = jax.random.PRNGKey(0)
    k_x, k_p = jax.random.split(key)

    # small GAN-ish input: batch=8, input_shape=(1, 16, 16) -> 256 features
    B, C, Himg, Wimg = 8, 1, 16, 16
    x_img = jax.random.normal(k_x, (B, C, Himg, Wimg), jnp.float32)

    params = init_params(k_p, C * Himg * Wimg)
    packed_w, packed_m = pack_params(params)

    out = discriminator_forward(x_img, packed_w, packed_m)
    out = jax.block_until_ready(out)
    assert out.shape == (B, 1)

    # exact-math check vs. reference using the same bf16-rounded weights
    ref_q = reference_forward(x_img, params, quantize_weights=True)
    np.testing.assert_allclose(np.asarray(out), np.asarray(ref_q), rtol=2e-2, atol=2e-2)
    # loose sanity check vs. full-precision f32 reference
    ref = reference_forward(x_img, params)
    np.testing.assert_allclose(np.asarray(out), np.asarray(ref), rtol=5e-2, atol=5e-2)

    print("KERNEL_OK")
</pallas_src>

<mosaic_0001>
module attributes {stable_mosaic.version = 11 : i64} {
  func.func @disc_kernel(%arg0: memref<8x256xf32, #tpu.memory_space<vmem>>, %arg1: memref<8x512xf32, #tpu.memory_space<vmem>>, %arg2: memref<576x512xbf16, #tpu.memory_space<any>>, %arg3: memref<8x1xf32, #tpu.memory_space<vmem>>, %arg4: memref<576x512xbf16, #tpu.memory_space<vmem>>, %arg5: memref<3x!tpu.dma_semaphore, #tpu.memory_space<semaphore_mem>>) attributes {dimension_semantics = [], scalar_prefetch = 0 : i64, scratch_operands = 2 : i64, tpu.core_type = #tpu.core_type<tc>} {
    %c0_i32 = arith.constant 0 : i32
    %c0_i32_0 = arith.constant 0 : i32
    %c0_i32_1 = arith.constant 0 : i32
    %0 = tpu.memref_slice %arg2[%c0_i32_0, %c0_i32_1] : memref<576x512xbf16, #tpu.memory_space<any>> -> memref<256x512xbf16, #tpu.memory_space<any>>
    %c0_i32_2 = arith.constant 0 : i32
    %c0_i32_3 = arith.constant 0 : i32
    %1 = tpu.memref_slice %arg4[%c0_i32_2, %c0_i32_3] : memref<576x512xbf16, #tpu.memory_space<vmem>> -> memref<256x512xbf16, #tpu.memory_space<vmem>>
    %2 = tpu.memref_slice %arg5[%c0_i32] : memref<3x!tpu.dma_semaphore, #tpu.memory_space<semaphore_mem>> -> memref<1x!tpu.dma_semaphore, #tpu.memory_space<semaphore_mem>>
    %3 = tpu.memref_squeeze %2 : memref<1x!tpu.dma_semaphore, #tpu.memory_space<semaphore_mem>> -> memref<!tpu.dma_semaphore, #tpu.memory_space<semaphore_mem>>
    tpu.enqueue_dma source(%0 : memref<256x512xbf16, #tpu.memory_space<any>>) target(%1 : memref<256x512xbf16, #tpu.memory_space<vmem>>) target_semaphore(%3 : memref<!tpu.dma_semaphore, #tpu.memory_space<semaphore_mem>>)
    %c1_i32 = arith.constant 1 : i32
    %c256_i32 = arith.constant 256 : i32
    %c0_i32_4 = arith.constant 0 : i32
    %4 = tpu.memref_slice %arg2[%c256_i32, %c0_i32_4] : memref<576x512xbf16, #tpu.memory_space<any>> -> memref<256x512xbf16, #tpu.memory_space<any>>
    %c256_i32_5 = arith.constant 256 : i32
    %c0_i32_6 = arith.constant 0 : i32
    %5 = tpu.memref_slice %arg4[%c256_i32_5, %c0_i32_6] : memref<576x512xbf16, #tpu.memory_space<vmem>> -> memref<256x512xbf16, #tpu.memory_space<vmem>>
    %6 = tpu.memref_slice %arg5[%c1_i32] : memref<3x!tpu.dma_semaphore, #tpu.memory_space<semaphore_mem>> -> memref<1x!tpu.dma_semaphore, #tpu.memory_space<semaphore_mem>>
    %7 = tpu.memref_squeeze %6 : memref<1x!tpu.dma_semaphore, #tpu.memory_space<semaphore_mem>> -> memref<!tpu.dma_semaphore, #tpu.memory_space<semaphore_mem>>
    tpu.enqueue_dma source(%4 : memref<256x512xbf16, #tpu.memory_space<any>>) target(%5 : memref<256x512xbf16, #tpu.memory_space<vmem>>) target_semaphore(%7 : memref<!tpu.dma_semaphore, #tpu.memory_space<semaphore_mem>>)
    %c2_i32 = arith.constant 2 : i32
    %c512_i32 = arith.constant 512 : i32
    %c0_i32_7 = arith.constant 0 : i32
    %8 = tpu.memref_slice %arg2[%c512_i32, %c0_i32_7] : memref<576x512xbf16, #tpu.memory_space<any>> -> memref<64x512xbf16, #tpu.memory_space<any>>
    %c512_i32_8 = arith.constant 512 : i32
    %c0_i32_9 = arith.constant 0 : i32
    %9 = tpu.memref_slice %arg4[%c512_i32_8, %c0_i32_9] : memref<576x512xbf16, #tpu.memory_space<vmem>> -> memref<64x512xbf16, #tpu.memory_space<vmem>>
    %10 = tpu.memref_slice %arg5[%c2_i32] : memref<3x!tpu.dma_semaphore, #tpu.memory_space<semaphore_mem>> -> memref<1x!tpu.dma_semaphore, #tpu.memory_space<semaphore_mem>>
    %11 = tpu.memref_squeeze %10 : memref<1x!tpu.dma_semaphore, #tpu.memory_space<semaphore_mem>> -> memref<!tpu.dma_semaphore, #tpu.memory_space<semaphore_mem>>
    tpu.enqueue_dma source(%8 : memref<64x512xbf16, #tpu.memory_space<any>>) target(%9 : memref<64x512xbf16, #tpu.memory_space<vmem>>) target_semaphore(%11 : memref<!tpu.dma_semaphore, #tpu.memory_space<semaphore_mem>>)
    %c0 = arith.constant 0 : index
    %c0_10 = arith.constant 0 : index
    %12 = vector.load %arg0[%c0, %c0_10] : memref<8x256xf32, #tpu.memory_space<vmem>>, vector<8x256xf32>
    %c0_11 = arith.constant 0 : index
    %c0_12 = arith.constant 0 : index
    %13 = vector.load %arg1[%c0_11, %c0_12] : memref<8x512xf32, #tpu.memory_space<vmem>>, vector<8x512xf32>
    %14 = vector.extract_strided_slice %13 {offsets = [0, 0], sizes = [1, 512], strides = [1, 1]} : vector<8x512xf32> to vector<1x512xf32>
    %15 = vector.extract_strided_slice %13 {offsets = [1, 0], sizes = [1, 256], strides = [1, 1]} : vector<8x512xf32> to vector<1x256xf32>
    %16 = vector.extract_strided_slice %13 {offsets = [2, 0], sizes = [1, 64], strides = [1, 1]} : vector<8x512xf32> to vector<1x64xf32>
    %17 = vector.extract_strided_slice %13 {offsets = [3, 0], sizes = [1, 1], strides = [1, 1]} : vector<8x512xf32> to vector<1x1xf32>
    %18 = vector.extract_strided_slice %13 {offsets = [4, 0], sizes = [1, 64], strides = [1, 1]} : vector<8x512xf32> to vector<1x64xf32>
    %c0_i32_13 = arith.constant 0 : i32
    %c0_i32_14 = arith.constant 0 : i32
    %c0_i32_15 = arith.constant 0 : i32
    %19 = tpu.memref_slice %arg2[%c0_i32_14, %c0_i32_15] : memref<576x512xbf16, #tpu.memory_space<any>> -> memref<256x512xbf16, #tpu.memory_space<any>>
    %c0_i32_16 = arith.constant 0 : i32
    %c0_i32_17 = arith.constant 0 : i32
    %20 = tpu.memref_slice %arg4[%c0_i32_16, %c0_i32_17] : memref<576x512xbf16, #tpu.memory_space<vmem>> -> memref<256x512xbf16, #tpu.memory_space<vmem>>
    %21 = tpu.memref_slice %arg5[%c0_i32_13] : memref<3x!tpu.dma_semaphore, #tpu.memory_space<semaphore_mem>> -> memref<1x!tpu.dma_semaphore, #tpu.memory_space<semaphore_mem>>
    %22 = tpu.memref_squeeze %21 : memref<1x!tpu.dma_semaphore, #tpu.memory_space<semaphore_mem>> -> memref<!tpu.dma_semaphore, #tpu.memory_space<semaphore_mem>>
    tpu.wait_dma2 semaphore(%22 : memref<!tpu.dma_semaphore, #tpu.memory_space<semaphore_mem>>) src(%19 : memref<256x512xbf16, #tpu.memory_space<any>>) dst(%20 : memref<256x512xbf16, #tpu.memory_space<vmem>>)
    %c0_18 = arith.constant 0 : index
    %c0_19 = arith.constant 0 : index
    %23 = vector.load %arg4[%c0_18, %c0_19] : memref<576x512xbf16, #tpu.memory_space<vmem>>, vector<256x512xbf16>
    %24 = arith.extf %23 : vector<256x512xbf16> to vector<256x512xf32>
    %cst = arith.constant dense<0.000000e+00> : vector<8x512xf32>
    %25 = tpu.matmul %12, %24, %cst {dimension_numbers = #tpu.dot_dimension_numbers<[1], [0], [0], [1], [0, 0, 1, 1], [], []>} : vector<8x256xf32>, vector<256x512xf32>, vector<8x512xf32> -> vector<8x512xf32>
    %26 = vector.broadcast %14 : vector<1x512xf32> to vector<8x512xf32>
    %27 = arith.addf %25, %26 : vector<8x512xf32>
    %cst_20 = arith.constant 2.000000e-01 : f32
    %28 = vector.broadcast %cst_20 : f32 to vector<8x512xf32>
    %29 = arith.mulf %28, %27 : vector<8x512xf32>
    %30 = arith.maximumf %27, %29 : vector<8x512xf32>
    %c1_i32_21 = arith.constant 1 : i32
    %c256_i32_22 = arith.constant 256 : i32
    %c0_i32_23 = arith.constant 0 : i32
    %31 = tpu.memref_slice %arg2[%c256_i32_22, %c0_i32_23] : memref<576x512xbf16, #tpu.memory_space<any>> -> memref<256x512xbf16, #tpu.memory_space<any>>
    %c256_i32_24 = arith.constant 256 : i32
    %c0_i32_25 = arith.constant 0 : i32
    %32 = tpu.memref_slice %arg4[%c256_i32_24, %c0_i32_25] : memref<576x512xbf16, #tpu.memory_space<vmem>> -> memref<256x512xbf16, #tpu.memory_space<vmem>>
    %33 = tpu.memref_slice %arg5[%c1_i32_21] : memref<3x!tpu.dma_semaphore, #tpu.memory_space<semaphore_mem>> -> memref<1x!tpu.dma_semaphore, #tpu.memory_space<semaphore_mem>>
    %34 = tpu.memref_squeeze %33 : memref<1x!tpu.dma_semaphore, #tpu.memory_space<semaphore_mem>> -> memref<!tpu.dma_semaphore, #tpu.memory_space<semaphore_mem>>
    tpu.wait_dma2 semaphore(%34 : memref<!tpu.dma_semaphore, #tpu.memory_space<semaphore_mem>>) src(%31 : memref<256x512xbf16, #tpu.memory_space<any>>) dst(%32 : memref<256x512xbf16, #tpu.memory_space<vmem>>)
    %c256 = arith.constant 256 : index
    %c0_26 = arith.constant 0 : index
    %35 = vector.load %arg4[%c256, %c0_26] : memref<576x512xbf16, #tpu.memory_space<vmem>>, vector<256x512xbf16>
    %36 = arith.extf %35 : vector<256x512xbf16> to vector<256x512xf32>
    %cst_27 = arith.constant dense<0.000000e+00> : vector<8x256xf32>
    %37 = tpu.matmul %30, %36, %cst_27 {dimension_numbers = #tpu.dot_dimension_numbers<[1], [1], [0], [0], [0, 0, 1, 0], [], []>} : vector<8x512xf32>, vector<256x512xf32>, vector<8x256xf32> -> vector<8x256xf32>
    %38 = vector.broadcast %15 : vector<1x256xf32> to vector<8x256xf32>
    %39 = arith.addf %37, %38 : vector<8x256xf32>
    %cst_28 = arith.constant 2.000000e-01 : f32
    %40 = vector.broadcast %cst_28 : f32 to vector<8x256xf32>
    %41 = arith.mulf %40, %39 : vector<8x256xf32>
    %42 = arith.maximumf %39, %41 : vector<8x256xf32>
    %c2_i32_29 = arith.constant 2 : i32
    %c512_i32_30 = arith.constant 512 : i32
    %c0_i32_31 = arith.constant 0 : i32
    %43 = tpu.memref_slice %arg2[%c512_i32_30, %c0_i32_31] : memref<576x512xbf16, #tpu.memory_space<any>> -> memref<64x512xbf16, #tpu.memory_space<any>>
    %c512_i32_32 = arith.constant 512 : i32
    %c0_i32_33 = arith.constant 0 : i32
    %44 = tpu.memref_slice %arg4[%c512_i32_32, %c0_i32_33] : memref<576x512xbf16, #tpu.memory_space<vmem>> -> memref<64x512xbf16, #tpu.memory_space<vmem>>
    %45 = tpu.memref_slice %arg5[%c2_i32_29] : memref<3x!tpu.dma_semaphore, #tpu.memory_space<semaphore_mem>> -> memref<1x!tpu.dma_semaphore, #tpu.memory_space<semaphore_mem>>
    %46 = tpu.memref_squeeze %45 : memref<1x!tpu.dma_semaphore, #tpu.memory_space<semaphore_mem>> -> memref<!tpu.dma_semaphore, #tpu.memory_space<semaphore_mem>>
    tpu.wait_dma2 semaphore(%46 : memref<!tpu.dma_semaphore, #tpu.memory_space<semaphore_mem>>) src(%43 : memref<64x512xbf16, #tpu.memory_space<any>>) dst(%44 : memref<64x512xbf16, #tpu.memory_space<vmem>>)
    %c512 = arith.constant 512 : index
    %c0_34 = arith.constant 0 : index
    %47 = vector.load %arg4[%c512, %c0_34] : memref<576x512xbf16, #tpu.memory_space<vmem>>, vector<64x256xbf16>
    %48 = arith.extf %47 : vector<64x256xbf16> to vector<64x256xf32>
    %cst_35 = arith.constant dense<0.000000e+00> : vector<8x64xf32>
    %49 = tpu.matmul %42, %48, %cst_35 {dimension_numbers = #tpu.dot_dimension_numbers<[1], [1], [0], [0], [0, 0, 1, 0], [], []>} : vector<8x256xf32>, vector<64x256xf32>, vector<8x64xf32> -> vector<8x64xf32>
    %50 = vector.broadcast %16 : vector<1x64xf32> to vector<8x64xf32>
    %51 = arith.addf %49, %50 : vector<8x64xf32>
    %cst_36 = arith.constant 2.000000e-01 : f32
    %52 = vector.broadcast %cst_36 : f32 to vector<8x64xf32>
    %53 = arith.mulf %52, %51 : vector<8x64xf32>
    %54 = arith.maximumf %51, %53 : vector<8x64xf32>
    %55 = vector.broadcast %18 : vector<1x64xf32> to vector<8x64xf32>
    %56 = arith.mulf %54, %55 : vector<8x64xf32>
    %cst_37 = arith.constant dense<0.000000e+00> : vector<8xf32>
    %57 = vector.multi_reduction <add>, %56, %cst_37 [1] : vector<8x64xf32> to vector<8xf32>
    %58 = vector.shape_cast %57 : vector<8xf32> to vector<8x1xf32>
    %59 = vector.broadcast %17 : vector<1x1xf32> to vector<8x1xf32>
    %60 = arith.addf %58, %59 : vector<8x1xf32>
    %c0_38 = arith.constant 0 : index
    %c0_39 = arith.constant 0 : index
    %61 = vector.load %arg3[%c0_38, %c0_39] : memref<8x1xf32, #tpu.memory_space<vmem>>, vector<8x1xf32>
    tpu.vector_store %arg3[%c0_38, %c0_39], %60 {strides = array<i32>} : memref<8x1xf32, #tpu.memory_space<vmem>>, vector<8x1xf32>,
    return
  }
}

</mosaic_0001>

<llo_original>
// kernel: tpu_custom_call.1
$region0: #{tpu_custom_call.1}
  #allocation0 [shape = 'u32[]', space=smem, size = 0x4, offset = 0x4, fixed_abs, tag = 'smem constant byte address 0x4 - core index']
  #allocation1 [shape = 'u32[144,128]{1,0:T(1,128)}', space=vmem, size = 0x12000, scoped, tag = 'internal scratch']
  #allocation2 [shape = 'bf16[576,512]{1,0:T(16,128)(2,1)}', space=vmem, size = 0x90000, scoped, tag = 'scratch operand']
  #allocation3 [shape = 's32[3]{0}', space=sflag, size = 0xc, scoped, tag = 'scratch operand']
  #allocation8 [shape = 's32[]', space=sflag, size = 0x4, offset = 0, fixed_abs, tag = 'sflag constant byte address 0x0 - dummy sync flag']
  #allocation10 [shape = 's32[]', space=sflag, size = 0x4, offset = 0, fixed_abs, tag = 'sflag constant byte address 0x0 - dummy sync flag']
  #allocation12 [shape = 's32[]', space=sflag, size = 0x4, offset = 0, fixed_abs, tag = 'sflag constant byte address 0x0 - dummy sync flag']
  %s0 = inlined_call_operand.hbm [shape: f32[8,256], index: 0, kind: input, shape index: {}]
  %s1 = inlined_call_operand.hbm [shape: f32[8,512], index: 1, kind: input, shape index: {}]
  %s2 = inlined_call_operand.hbm [shape: bf16[576,512], index: 2, kind: input, shape index: {}]
  %s3 = inlined_call_operand.vmem [shape: f32[8,1], index: 3, kind: output, shape index: {}]
  %s4 = sld [smem:[#allocation0]]
  $region26: #{tpu_custom_call.1} parent=0
    _
  %s6 = ssub.s32 1, %s4
  %s7 = scalar_select 0, %s6, %s4
  $region1: #{tpu_custom_call.1} parent=0
    #allocation4 [shape = 'u8[8192]{0}', space=vmem, size = 0x2000, scoped, tag = 'input window, operand 0, single buffered']
    #allocation5 [shape = 's32[1]{0}', space=sflag, size = 0x4, scoped, tag = 'scoped memory for tpu_custom_call.1']
    #allocation6 [shape = 'u8[16384]{0}', space=vmem, size = 0x4000, scoped, tag = 'input window, operand 1, single buffered']
    #allocation7 [shape = 's32[1]{0}', space=sflag, size = 0x4, scoped, tag = 'scoped memory for tpu_custom_call.1']
    #allocation9 [shape = 'u32[9]{0}', space=smem, size = 0x24, scoped, tag = 'DMA stride descriptor']
    #allocation11 [shape = 'u32[9]{0}', space=smem, size = 0x24, scoped, tag = 'DMA stride descriptor']
    #allocation13 [shape = 'u32[9]{0}', space=smem, size = 0x24, scoped, tag = 'DMA stride descriptor']
    %8 = vsyncpa [#allocation5], 0
    %9 = vsyncpa [#allocation7], 0
    // Predicated region
    $region2: #{tpu_custom_call.1} parent=1 // pred_check
      _
    $region3: #{tpu_custom_call.1} parent=1 // pred_check_branch
      %11 = sbr.rel (0) target = $region5
    $region4: #{tpu_custom_call.1} parent=1 // pred_region
      %s13 = ssub.s32 256, 256
      %14 = vsyncadd [#allocation5], %s13
      %s16 = sshll.u32 [#allocation4], 4
      %s17 = int_to_ptr.vmem [resolvable:$true] %s16
      %19 = dma.hbm_to_vmem [thread:$0]  %s0, 256, %s17, [#allocation5]
    $region5: #{tpu_custom_call.1} parent=1 // pred_fallthru
      _
    // Predicated region
    $region6: #{tpu_custom_call.1} parent=1 // pred_check
      _
    $region7: #{tpu_custom_call.1} parent=1 // pred_check_branch
      %21 = sbr.rel (0) target = $region9
    $region8: #{tpu_custom_call.1} parent=1 // pred_region
      %s23 = ssub.s32 512, 512
      %24 = vsyncadd [#allocation7], %s23
      %s26 = sshll.u32 [#allocation6], 4
      %s27 = int_to_ptr.vmem [resolvable:$true] %s26
      %29 = dma.hbm_to_vmem [thread:$0]  %s1, 512, %s27, [#allocation7]
    $region9: #{tpu_custom_call.1} parent=1 // pred_fallthru
      _
    // Predicated region
    $region10: #{tpu_custom_call.1} parent=1 // pred_check
      _
    $region11: #{tpu_custom_call.1} parent=1 // pred_check_branch
      %31 = sbr.rel (0) target = $region13
    $region12: #{tpu_custom_call.1} parent=1 // pred_region
      %32 = dma.done [#allocation5], 256
    $region13: #{tpu_custom_call.1} parent=1 // pred_fallthru
      _
    // Predicated region
    $region14: #{tpu_custom_call.1} parent=1 // pred_check
      _
    $region15: #{tpu_custom_call.1} parent=1 // pred_check_branch
      %34 = sbr.rel (0) target = $region17
    $region16: #{tpu_custom_call.1} parent=1 // pred_region
      %35 = dma.done [#allocation7], 512
    $region17: #{tpu_custom_call.1} parent=1 // pred_fallthru
      _
    %s37 = sshll.u32 1, 14
    %s38 = sxor.u32 4294967295, %s37
    %s40 = sld [smem:[#allocation0]]
    %s41 = sadd.s32 2, %s40
    %s43 = sshll.u32 7, 26
    %s44 = sxor.u32 4294967295, %s43
    %s45 = sand.u32 0, %s44
    %s46 = sshll.u32 %s41, 26
    %s47 = sor.u32 %s45, %s46
    %s48 = sshll.u32 [#allocation2], 4
    %s49 = int_to_ptr.vmem [resolvable:$true] %s48
    %52 = sst [smem:[#allocation9]] 512
    %s53 = scalar_lea.smem [#allocation9], 1
    %54 = sst [smem:[%s53]] 512
    %s55 = scalar_lea.smem [#allocation9], 2
    %56 = sst [smem:[%s55]] 4
    %s57 = scalar_lea.smem [#allocation9], 3
    %58 = sst [smem:[%s57]] 64
    %s59 = scalar_lea.smem [#allocation9], 4
    %60 = sst [smem:[%s59]] 128
    %s61 = scalar_lea.smem [#allocation9], 5
    %62 = sst [smem:[%s61]] 2
    %s63 = scalar_lea.smem [#allocation9], 6
    %64 = sst [smem:[%s63]] 256
    %s65 = scalar_lea.smem [#allocation9], 7
    %66 = sst [smem:[%s65]] 64
    %s67 = scalar_lea.smem [#allocation9], 8
    %68 = sst [smem:[%s67]] 4
    %70 = dma.general %s2, 8192, %s49, [#allocation3], [#allocation8], [#allocation9], %s47, 0
    %s71 = scalar_lea.hbm %s2, 8192
    %s72 = scalar_lea.vmem [#allocation2], 512
    %s73 = scalar_lea.sflag [#allocation3], 1
    %s75 = sshll.u32 1, 14
    %s76 = sxor.u32 4294967295, %s75
    %s78 = sadd.s32 2, %s40
    %s80 = sshll.u32 7, 26
    %s81 = sxor.u32 4294967295, %s80
    %s82 = sand.u32 0, %s81
    %s83 = sshll.u32 %s78, 26
    %s84 = sor.u32 %s82, %s83
    %s85 = sshll.u32 %s72, 4
    %s86 = int_to_ptr.vmem [resolvable:$true] %s85
    %89 = sst [smem:[#allocation11]] 512
    %s90 = scalar_lea.smem [#allocation11], 1
    %91 = sst [smem:[%s90]] 512
    %s92 = scalar_lea.smem [#allocation11], 2
    %93 = sst [smem:[%s92]] 4
    %s94 = scalar_lea.smem [#allocation11], 3
    %95 = sst [smem:[%s94]] 64
    %s96 = scalar_lea.smem [#allocation11], 4
    %97 = sst [smem:[%s96]] 128
    %s98 = scalar_lea.smem [#allocation11], 5
    %99 = sst [smem:[%s98]] 2
    %s100 = scalar_lea.smem [#allocation11], 6
    %101 = sst [smem:[%s100]] 256
    %s102 = scalar_lea.smem [#allocation11], 7
    %103 = sst [smem:[%s102]] 64
    %s104 = scalar_lea.smem [#allocation11], 8
    %105 = sst [smem:[%s104]] 4
    %107 = dma.general %s71, 8192, %s86, %s73, [#allocation10], [#allocation11], %s84, 0
    %s108 = scalar_lea.hbm %s2, 16384
    %s109 = scalar_lea.vmem [#allocation2], 1024
    %s110 = scalar_lea.sflag [#allocation3], 2
    %s112 = sshll.u32 1, 14
    %s113 = sxor.u32 4294967295, %s112
    %s115 = sadd.s32 2, %s40
    %s117 = sshll.u32 7, 26
    %s118 = sxor.u32 4294967295, %s117
    %s119 = sand.u32 0, %s118
    %s120 = sshll.u32 %s115, 26
    %s121 = sor.u32 %s119, %s120
    %s122 = sshll.u32 %s109, 4
    %s123 = int_to_ptr.vmem [resolvable:$true] %s122
    %126 = sst [smem:[#allocation13]] 512
    %s127 = scalar_lea.smem [#allocation13], 1
    %128 = sst [smem:[%s127]] 512
    %s129 = scalar_lea.smem [#allocation13], 2
    %130 = sst [smem:[%s129]] 4
    %s131 = scalar_lea.smem [#allocation13], 3
    %132 = sst [smem:[%s131]] 64
    %s133 = scalar_lea.smem [#allocation13], 4
    %134 = sst [smem:[%s133]] 128
    %s135 = scalar_lea.smem [#allocation13], 5
    %136 = sst [smem:[%s135]] 2
    %s137 = scalar_lea.smem [#allocation13], 6
    %138 = sst [smem:[%s137]] 256
    %s139 = scalar_lea.smem [#allocation13], 7
    %140 = sst [smem:[%s139]] 64
    %s141 = scalar_lea.smem [#allocation13], 8
    %142 = sst [smem:[%s141]] 4
    %144 = dma.general %s108, 2048, %s123, %s110, [#allocation12], [#allocation13], %s121, 0
    %v145 = vld [vmem:[#allocation4] sm:$0xff]
    %v146 = vld [vmem:[#allocation4 + $0x8] sm:$0xff]
    %v147 = vld [vmem:[#allocation6] sm:$0xff]
    %v148 = vld [vmem:[#allocation6 + $0x8] sm:$0xff]
    %v149 = vld [vmem:[#allocation6 + $0x10] sm:$0xff]
    %v150 = vld [vmem:[#allocation6 + $0x18] sm:$0xff]
    %s151 = smul.u32 4, 32
    %s152 = smul.u32 %s151, 4
    %s153 = sshll.u32 %s152, 4
    %154 = dma.done [#allocation3], %s153
    %v155 = vld [vmem:[#allocation2] sm:$0xff]
    %v156 = vld [vmem:[#allocation2 + $0x8] sm:$0xff]
    %v157 = vld [vmem:[#allocation2 + $0x10] sm:$0xff]
    %v158 = vld [vmem:[#allocation2 + $0x18] sm:$0xff]
    %v159 = vld [vmem:[#allocation2 + $0x20] sm:$0xff]
    %v160 = vld [vmem:[#allocation2 + $0x28] sm:$0xff]
    %v161 = vld [vmem:[#allocation2 + $0x30] sm:$0xff]
    %v162 = vld [vmem:[#allocation2 + $0x38] sm:$0xff]
    %v163 = vld [vmem:[#allocation2 + $0x40] sm:$0xff]
    %v164 = vld [vmem:[#allocation2 + $0x48] sm:$0xff]
    %v165 = vld [vmem:[#allocation2 + $0x50] sm:$0xff]
    %v166 = vld [vmem:[#allocation2 + $0x58] sm:$0xff]
    %v167 = vld [vmem:[#allocation2 + $0x60] sm:$0xff]
    %v168 = vld [vmem:[#allocation2 + $0x68] sm:$0xff]
    %v169 = vld [vmem:[#allocation2 + $0x70] sm:$0xff]
    %v170 = vld [vmem:[#allocation2 + $0x78] sm:$0xff]
    %v171 = vld [vmem:[#allocation2 + $0x80] sm:$0xff]
    %v172 = vld [vmem:[#allocation2 + $0x88] sm:$0xff]
    %v173 = vld [vmem:[#allocation2 + $0x90] sm:$0xff]
    %v174 = vld [vmem:[#allocation2 + $0x98] sm:$0xff]
    %v175 = vld [vmem:[#allocation2 + $0xa0] sm:$0xff]
    %v176 = vld [vmem:[#allocation2 + $0xa8] sm:$0xff]
    %v177 = vld [vmem:[#allocation2 + $0xb0] sm:$0xff]
    %v178 = vld [vmem:[#allocation2 + $0xb8] sm:$0xff]
    %v179 = vld [vmem:[#allocation2 + $0xc0] sm:$0xff]
    %v180 = vld [vmem:[#allocation2 + $0xc8] sm:$0xff]
    %v181 = vld [vmem:[#allocation2 + $0xd0] sm:$0xff]
    %v182 = vld [vmem:[#allocation2 + $0xd8] sm:$0xff]
    %v183 = vld [vmem:[#allocation2 + $0xe0] sm:$0xff]
    %v184 = vld [vmem:[#allocation2 + $0xe8] sm:$0xff]
    %v185 = vld [vmem:[#allocation2 + $0xf0] sm:$0xff]
    %v186 = vld [vmem:[#allocation2 + $0xf8] sm:$0xff]
    %v187 = vld [vmem:[#allocation2 + $0x100] sm:$0xff]
    %v188 = vld [vmem:[#allocation2 + $0x108] sm:$0xff]
    %v189 = vld [vmem:[#allocation2 + $0x110] sm:$0xff]
    %v190 = vld [vmem:[#allocation2 + $0x118] sm:$0xff]
    %v191 = vld [vmem:[#allocation2 + $0x120] sm:$0xff]
    %v192 = vld [vmem:[#allocation2 + $0x128] sm:$0xff]
    %v193 = vld [vmem:[#allocation2 + $0x130] sm:$0xff]
    %v194 = vld [vmem:[#allocation2 + $0x138] sm:$0xff]
    %v195 = vld [vmem:[#allocation2 + $0x140] sm:$0xff]
    %v196 = vld [vmem:[#allocation2 + $0x148] sm:$0xff]
    %v197 = vld [vmem:[#allocation2 + $0x150] sm:$0xff]
    %v198 = vld [vmem:[#allocation2 + $0x158] sm:$0xff]
    %v199 = vld [vmem:[#allocation2 + $0x160] sm:$0xff]
    %v200 = vld [vmem:[#allocation2 + $0x168] sm:$0xff]
    %v201 = vld [vmem:[#allocation2 + $0x170] sm:$0xff]
    %v202 = vld [vmem:[#allocation2 + $0x178] sm:$0xff]
    %v203 = vld [vmem:[#allocation2 + $0x180] sm:$0xff]
    %v204 = vld [vmem:[#allocation2 + $0x188] sm:$0xff]
    %v205 = vld [vmem:[#allocation2 + $0x190] sm:$0xff]
    %v206 = vld [vmem:[#allocation2 + $0x198] sm:$0xff]
    %v207 = vld [vmem:[#allocation2 + $0x1a0] sm:$0xff]
    %v208 = vld [vmem:[#allocation2 + $0x1a8] sm:$0xff]
    %v209 = vld [vmem:[#allocation2 + $0x1b0] sm:$0xff]
    %v210 = vld [vmem:[#allocation2 + $0x1b8] sm:$0xff]
    %v211 = vld [vmem:[#allocation2 + $0x1c0] sm:$0xff]
    %v212 = vld [vmem:[#allocation2 + $0x1c8] sm:$0xff]
    %v213 = vld [vmem:[#allocation2 + $0x1d0] sm:$0xff]
    %v214 = vld [vmem:[#allocation2 + $0x1d8] sm:$0xff]
    %v215 = vld [vmem:[#allocation2 + $0x1e0] sm:$0xff]
    %v216 = vld [vmem:[#allocation2 + $0x1e8] sm:$0xff]
    %v217 = vld [vmem:[#allocation2 + $0x1f0] sm:$0xff]
    %v218 = vld [vmem:[#allocation2 + $0x1f8] sm:$0xff]
    %v219 = vunpack.c.l.bf16 %v155
    %v220 = vunpack.c.l.bf16 %v156
    %v221 = vunpack.c.l.bf16 %v157
    %v222 = vunpack.c.l.bf16 %v158
    %v223 = vunpack.c.h.bf16 %v155
    %v224 = vunpack.c.h.bf16 %v156
    %v225 = vunpack.c.h.bf16 %v157
    %v226 = vunpack.c.h.bf16 %v158
    %v227 = vunpack.c.l.bf16 %v159
    %v228 = vunpack.c.l.bf16 %v160
    %v229 = vunpack.c.l.bf16 %v161
    %v230 = vunpack.c.l.bf16 %v162
    %v231 = vunpack.c.h.bf16 %v159
    %v232 = vunpack.c.h.bf16 %v160
    %v233 = vunpack.c.h.bf16 %v161
    %v234 = vunpack.c.h.bf16 %v162
    %v235 = vunpack.c.l.bf16 %v163
    %v236 = vunpack.c.l.bf16 %v164
    %v237 = vunpack.c.l.bf16 %v165
    %v238 = vunpack.c.l.bf16 %v166
    %v239 = vunpack.c.h.bf16 %v163
    %v240 = vunpack.c.h.bf16 %v164
    %v241 = vunpack.c.h.bf16 %v165
    %v242 = vunpack.c.h.bf16 %v166
    %v243 = vunpack.c.l.bf16 %v167
    %v244 = vunpack.c.l.bf16 %v168
    %v245 = vunpack.c.l.bf16 %v169
    %v246 = vunpack.c.l.bf16 %v170
    %v247 = vunpack.c.h.bf16 %v167
    %v248 = vunpack.c.h.bf16 %v168
    %v249 = vunpack.c.h.bf16 %v169
    %v250 = vunpack.c.h.bf16 %v170
    %v251 = vunpack.c.l.bf16 %v171
    %v252 = vunpack.c.l.bf16 %v172
    %v253 = vunpack.c.l.bf16 %v173
    %v254 = vunpack.c.l.bf16 %v174
    %v255 = vunpack.c.h.bf16 %v171
    %v256 = vunpack.c.h.bf16 %v172
    %v257 = vunpack.c.h.bf16 %v173
    %v258 = vunpack.c.h.bf16 %v174
    %v259 = vunpack.c.l.bf16 %v175
    %v260 = vunpack.c.l.bf16 %v176
    %v261 = vunpack.c.l.bf16 %v177
    %v262 = vunpack.c.l.bf16 %v178
    %v263 = vunpack.c.h.bf16 %v175
    %v264 = vunpack.c.h.bf16 %v176
    %v265 = vunpack.c.h.bf16 %v177
    %v266 = vunpack.c.h.bf16 %v178
    %v267 = vunpack.c.l.bf16 %v179
    %v268 = vunpack.c.l.bf16 %v180
    %v269 = vunpack.c.l.bf16 %v181
    %v270 = vunpack.c.l.bf16 %v182
    %v271 = vunpack.c.h.bf16 %v179
    %v272 = vunpack.c.h.bf16 %v180
    %v273 = vunpack.c.h.bf16 %v181
    %v274 = vunpack.c.h.bf16 %v182
    %v275 = vunpack.c.l.bf16 %v183
    %v276 = vunpack.c.l.bf16 %v184
    %v277 = vunpack.c.l.bf16 %v185
    %v278 = vunpack.c.l.bf16 %v186
    %v279 = vunpack.c.h.bf16 %v183
    %v280 = vunpack.c.h.bf16 %v184
    %v281 = vunpack.c.h.bf16 %v185
    %v282 = vunpack.c.h.bf16 %v186
    %v283 = vunpack.c.l.bf16 %v187
    %v284 = vunpack.c.l.bf16 %v188
    %v285 = vunpack.c.l.bf16 %v189
    %v286 = vunpack.c.l.bf16 %v190
    %v287 = vunpack.c.h.bf16 %v187
    %v288 = vunpack.c.h.bf16 %v188
    %v289 = vunpack.c.h.bf16 %v189
    %v290 = vunpack.c.h.bf16 %v190
    %v291 = vunpack.c.l.bf16 %v191
    %v292 = vunpack.c.l.bf16 %v192
    %v293 = vunpack.c.l.bf16 %v193
    %v294 = vunpack.c.l.bf16 %v194
    %v295 = vunpack.c.h.bf16 %v191
    %v296 = vunpack.c.h.bf16 %v192
    %v297 = vunpack.c.h.bf16 %v193
    %v298 = vunpack.c.h.bf16 %v194
    %v299 = vunpack.c.l.bf16 %v195
    %v300 = vunpack.c.l.bf16 %v196
    %v301 = vunpack.c.l.bf16 %v197
    %v302 = vunpack.c.l.bf16 %v198
    %v303 = vunpack.c.h.bf16 %v195
    %v304 = vunpack.c.h.bf16 %v196
    %v305 = vunpack.c.h.bf16 %v197
    %v306 = vunpack.c.h.bf16 %v198
    %v307 = vunpack.c.l.bf16 %v199
    %v308 = vunpack.c.l.bf16 %v200
    %v309 = vunpack.c.l.bf16 %v201
    %v310 = vunpack.c.l.bf16 %v202
    %v311 = vunpack.c.h.bf16 %v199
    %v312 = vunpack.c.h.bf16 %v200
    %v313 = vunpack.c.h.bf16 %v201
    %v314 = vunpack.c.h.bf16 %v202
    %v315 = vunpack.c.l.bf16 %v203
    %v316 = vunpack.c.l.bf16 %v204
    %v317 = vunpack.c.l.bf16 %v205
    %v318 = vunpack.c.l.bf16 %v206
    %v319 = vunpack.c.h.bf16 %v203
    %v320 = vunpack.c.h.bf16 %v204
    %v321 = vunpack.c.h.bf16 %v205
    %v322 = vunpack.c.h.bf16 %v206
    %v323 = vunpack.c.l.bf16 %v207
    %v324 = vunpack.c.l.bf16 %v208
    %v325 = vunpack.c.l.bf16 %v209
    %v326 = vunpack.c.l.bf16 %v210
    %v327 = vunpack.c.h.bf16 %v207
    %v328 = vunpack.c.h.bf16 %v208
    %v329 = vunpack.c.h.bf16 %v209
    %v330 = vunpack.c.h.bf16 %v210
    %v331 = vunpack.c.l.bf16 %v211
    %v332 = vunpack.c.l.bf16 %v212
    %v333 = vunpack.c.l.bf16 %v213
    %v334 = vunpack.c.l.bf16 %v214
    %v335 = vunpack.c.h.bf16 %v211
    %v336 = vunpack.c.h.bf16 %v212
    %v337 = vunpack.c.h.bf16 %v213
    %v338 = vunpack.c.h.bf16 %v214
    %v339 = vunpack.c.l.bf16 %v215
    %v340 = vunpack.c.l.bf16 %v216
    %v341 = vunpack.c.l.bf16 %v217
    %v342 = vunpack.c.l.bf16 %v218
    %v343 = vunpack.c.h.bf16 %v215
    %v344 = vunpack.c.h.bf16 %v216
    %v345 = vunpack.c.h.bf16 %v217
    %v346 = vunpack.c.h.bf16 %v218
    %v347 = vlaneseq
    %v348 = vshrl.u32 %v347, 7
    %v349 = vsub.s32 0, %v348
    %v350 = vrot.slane %v147, %v349
    %v351 = vlaneseq
    %v352 = vshrl.u32 %v351, 7
    %v353 = vsub.s32 0, %v352
    %v354 = vrot.slane %v148, %v353
    %v355 = vlaneseq
    %v356 = vshrl.u32 %v355, 7
    %v357 = vsub.s32 0, %v356
    %v358 = vrot.slane %v149, %v357
    %v359 = vlaneseq
    %v360 = vshrl.u32 %v359, 7
    %v361 = vsub.s32 0, %v360
    %v362 = vrot.slane %v150, %v361
    %363 = vmatprep.subr.mxu0 %v220
    %364 = vmatpush1.msra.mxu0 %v219
    %365 = vmatprep.subr.mxu0 %v224
    %366 = vmatpush1.msra.mxu0 %v223
    %367 = vmatprep.subr.mxu0 %v228
    %368 = vmatpush1.msra.mxu0 %v227
    %369 = vmatprep.subr.mxu0 %v232
    %370 = vmatpush1.msra.mxu0 %v231
    %371 = vmatprep.subr.mxu0 %v236
    %372 = vmatpush1.msra.mxu0 %v235
    %373 = vmatprep.subr.mxu0 %v240
    %374 = vmatpush1.msra.mxu0 %v239
    %375 = vmatprep.subr.mxu0 %v244
    %376 = vmatpush1.msra.mxu0 %v243
    %377 = vmatprep.subr.mxu0 %v248
    %378 = vmatpush1.msra.mxu0 %v247
    %379 = vmatprep.subr.mxu0 %v252
    %380 = vmatpush1.msra.mxu0 %v251
    %381 = vmatprep.subr.mxu0 %v256
    %382 = vmatpush1.msra.mxu0 %v255
    %383 = vmatprep.subr.mxu0 %v260
    %384 = vmatpush1.msra.mxu0 %v259
    %385 = vmatprep.subr.mxu0 %v264
    %386 = vmatpush1.msra.mxu0 %v263
    %387 = vmatprep.subr.mxu0 %v268
    %388 = vmatpush1.msra.mxu0 %v267
    %389 = vmatprep.subr.mxu0 %v272
    %390 = vmatpush1.msra.mxu0 %v271
    %391 = vmatprep.subr.mxu0 %v276
    %392 = vmatpush1.msra.mxu0 %v275
    %393 = vmatprep.subr.mxu0 %v280
    %394 = vmatpush1.msra.mxu0 %v279
    %395 = vmatprep.subr.mxu0 %v284
    %396 = vmatpush1.msra.mxu0 %v283
    %397 = vmatprep.subr.mxu0 %v288
    %398 = vmatpush1.msra.mxu0 %v287
    %399 = vmatprep.subr.mxu0 %v292
    %400 = vmatpush1.msra.mxu0 %v291
    %401 = vmatprep.subr.mxu0 %v296
    %402 = vmatpush1.msra.mxu0 %v295
    %403 = vmatprep.subr.mxu0 %v300
    %404 = vmatpush1.msra.mxu0 %v299
    %405 = vmatprep.subr.mxu0 %v304
    %406 = vmatpush1.msra.mxu0 %v303
    %407 = vmatprep.subr.mxu0 %v308
    %408 = vmatpush1.msra.mxu0 %v307
    %409 = vmatprep.subr.mxu0 %v312
    %410 = vmatpush1.msra.mxu0 %v311
    %411 = vmatprep.subr.mxu0 %v316
    %412 = vmatpush1.msra.mxu0 %v315
    %413 = vmatprep.subr.mxu0 %v320
    %414 = vmatpush1.msra.mxu0 %v319
    %415 = vmatprep.subr.mxu0 %v324
    %416 = vmatpush1.msra.mxu0 %v323
    %417 = vmatprep.subr.mxu0 %v328
    %418 = vmatpush1.msra.mxu0 %v327
    %419 = vmatprep.subr.mxu0 %v332
    %420 = vmatpush1.msra.mxu0 %v331
    %421 = vmatprep.subr.mxu0 %v336
    %422 = vmatpush1.msra.mxu0 %v335
    %423 = vmatprep.subr.mxu0 %v340
    %424 = vmatpush1.msra.mxu0 %v339
    %425 = vmatprep.subr.mxu0 %v344
    %426 = vmatpush1.msra.mxu0 %v343
    %427 = vmatprep.mubr.f32.mxu0 %v146
    %428 = vmatmul.mubr.f32.gmra.mrb[0].mxu0 %v145
    %v429 = vpop.f32.mrb[0].mxu0
    %v430 = vadd.f32 %v350, %v429
    %v431 = vpop.f32.mrb[0].mxu0
    %v432 = vadd.f32 %v354, %v431
    %433 = vdwg.mxu0
    %434 = vmatprep.subr.mxu0 %v222
    %435 = vmatpush1.msra.mxu0 %v221
    %436 = vmatprep.subr.mxu0 %v226
    %437 = vmatpush1.msra.mxu0 %v225
    %438 = vmatprep.subr.mxu0 %v230
    %439 = vmatpush1.msra.mxu0 %v229
    %440 = vmatprep.subr.mxu0 %v234
    %441 = vmatpush1.msra.mxu0 %v233
    %442 = vmatprep.subr.mxu0 %v238
    %443 = vmatpush1.msra.mxu0 %v237
    %444 = vmatprep.subr.mxu0 %v242
    %445 = vmatpush1.msra.mxu0 %v241
    %446 = vmatprep.subr.mxu0 %v246
    %447 = vmatpush1.msra.mxu0 %v245
    %448 = vmatprep.subr.mxu0 %v250
    %449 = vmatpush1.msra.mxu0 %v249
    %450 = vmatprep.subr.mxu0 %v254
    %451 = vmatpush1.msra.mxu0 %v253
    %452 = vmatprep.subr.mxu0 %v258
    %453 = vmatpush1.msra.mxu0 %v257
    %454 = vmatprep.subr.mxu0 %v262
    %455 = vmatpush1.msra.mxu0 %v261
    %456 = vmatprep.subr.mxu0 %v266
    %457 = vmatpush1.msra.mxu0 %v265
    %458 = vmatprep.subr.mxu0 %v270
    %459 = vmatpush1.msra.mxu0 %v269
    %460 = vmatprep.subr.mxu0 %v274
    %461 = vmatpush1.msra.mxu0 %v273
    %462 = vmatprep.subr.mxu0 %v278
    %463 = vmatpush1.msra.mxu0 %v277
    %464 = vmatprep.subr.mxu0 %v282
    %465 = vmatpush1.msra.mxu0 %v281
    %466 = vmatprep.subr.mxu0 %v286
    %467 = vmatpush1.msra.mxu0 %v285
    %468 = vmatprep.subr.mxu0 %v290
    %469 = vmatpush1.msra.mxu0 %v289
    %470 = vmatprep.subr.mxu0 %v294
    %471 = vmatpush1.msra.mxu0 %v293
    %472 = vmatprep.subr.mxu0 %v298
    %473 = vmatpush1.msra.mxu0 %v297
    %474 = vmatprep.subr.mxu0 %v302
    %475 = vmatpush1.msra.mxu0 %v301
    %476 = vmatprep.subr.mxu0 %v306
    %477 = vmatpush1.msra.mxu0 %v305
    %478 = vmatprep.subr.mxu0 %v310
    %479 = vmatpush1.msra.mxu0 %v309
    %480 = vmatprep.subr.mxu0 %v314
    %481 = vmatpush1.msra.mxu0 %v313
    %482 = vmatprep.subr.mxu0 %v318
    %483 = vmatpush1.msra.mxu0 %v317
    %484 = vmatprep.subr.mxu0 %v322
    %485 = vmatpush1.msra.mxu0 %v321
    %486 = vmatprep.subr.mxu0 %v326
    %487 = vmatpush1.msra.mxu0 %v325
    %488 = vmatprep.subr.mxu0 %v330
    %489 = vmatpush1.msra.mxu0 %v329
    %490 = vmatprep.subr.mxu0 %v334
    %491 = vmatpush1.msra.mxu0 %v333
    %492 = vmatprep.subr.mxu0 %v338
    %493 = vmatpush1.msra.mxu0 %v337
    %494 = vmatprep.subr.mxu0 %v342
    %495 = vmatpush1.msra.mxu0 %v341
    %496 = vmatprep.subr.mxu0 %v346
    %497 = vmatpush1.msra.mxu0 %v345
    %498 = vmatprep.mubr.f32.mxu0 %v146
    %499 = vmatmul.mubr.f32.gmra.mrb[0].mxu0 %v145
    %v500 = vpop.f32.mrb[0].mxu0
    %v501 = vadd.f32 %v358, %v500
    %v502 = vpop.f32.mrb[0].mxu0
    %v503 = vadd.f32 %v362, %v502
    %504 = vdwg.mxu0
    %v505 = vmul.f32 %v430, 0.2
    %v506 = vmul.f32 %v432, 0.2
    %v507 = vmul.f32 %v501, 0.2
    %v508 = vmul.f32 %v503, 0.2
    %v509 = vmax.f32 %v430, %v505
    %v510 = vmax.f32 %v432, %v506
    %v511 = vmax.f32 %v501, %v507
    %v512 = vmax.f32 %v503, %v508
    %s513 = sshll.u32 %s152, 4
    %514 = dma.done %s73, %s513
    %v515 = vld [vmem:[#allocation2 + $0x200] sm:$0xff]
    %v516 = vld [vmem:[#allocation2 + $0x208] sm:$0xff]
    %v517 = vld [vmem:[#allocation2 + $0x210] sm:$0xff]
    %v518 = vld [vmem:[#allocation2 + $0x218] sm:$0xff]
    %v519 = vld [vmem:[#allocation2 + $0x220] sm:$0xff]
    %v520 = vld [vmem:[#allocation2 + $0x228] sm:$0xff]
    %v521 = vld [vmem:[#allocation2 + $0x230] sm:$0xff]
    %v522 = vld [vmem:[#allocation2 + $0x238] sm:$0xff]
    %v523 = vld [vmem:[#allocation2 + $0x240] sm:$0xff]
    %v524 = vld [vmem:[#allocation2 + $0x248] sm:$0xff]
    %v525 = vld [vmem:[#allocation2 + $0x250] sm:$0xff]
    %v526 = vld [vmem:[#allocation2 + $0x258] sm:$0xff]
    %v527 = vld [vmem:[#allocation2 + $0x260] sm:$0xff]
    %v528 = vld [vmem:[#allocation2 + $0x268] sm:$0xff]
    %v529 = vld [vmem:[#allocation2 + $0x270] sm:$0xff]
    %v530 = vld [vmem:[#allocation2 + $0x278] sm:$0xff]
    %v531 = vld [vmem:[#allocation2 + $0x280] sm:$0xff]
    %v532 = vld [vmem:[#allocation2 + $0x288] sm:$0xff]
    %v533 = vld [vmem:[#allocation2 + $0x290] sm:$0xff]
    %v534 = vld [vmem:[#allocation2 + $0x298] sm:$0xff]
    %v535 = vld [vmem:[#allocation2 + $0x2a0] sm:$0xff]
    %v536 = vld [vmem:[#allocation2 + $0x2a8] sm:$0xff]
    %v537 = vld [vmem:[#allocation2 + $0x2b0] sm:$0xff]
    %v538 = vld [vmem:[#allocation2 + $0x2b8] sm:$0xff]
    %v539 = vld [vmem:[#allocation2 + $0x2c0] sm:$0xff]
    %v540 = vld [vmem:[#allocation2 + $0x2c8] sm:$0xff]
    %v541 = vld [vmem:[#allocation2 + $0x2d0] sm:$0xff]
    %v542 = vld [vmem:[#allocation2 + $0x2d8] sm:$0xff]
    %v543 = vld [vmem:[#allocation2 + $0x2e0] sm:$0xff]
    %v544 = vld [vmem:[#allocation2 + $0x2e8] sm:$0xff]
    %v545 = vld [vmem:[#allocation2 + $0x2f0] sm:$0xff]
    %v546 = vld [vmem:[#allocation2 + $0x2f8] sm:$0xff]
    %v547 = vld [vmem:[#allocation2 + $0x300] sm:$0xff]
    %v548 = vld [vmem:[#allocation2 + $0x308] sm:$0xff]
    %v549 = vld [vmem:[#allocation2 + $0x310] sm:$0xff]
    %v550 = vld [vmem:[#allocation2 + $0x318] sm:$0xff]
    %v551 = vld [vmem:[#allocation2 + $0x320] sm:$0xff]
    %v552 = vld [vmem:[#allocation2 + $0x328] sm:$0xff]
    %v553 = vld [vmem:[#allocation2 + $0x330] sm:$0xff]
    %v554 = vld [vmem:[#allocation2 + $0x338] sm:$0xff]
    %v555 = vld [vmem:[#allocation2 + $0x340] sm:$0xff]
    %v556 = vld [vmem:[#allocation2 + $0x348] sm:$0xff]
    %v557 = vld [vmem:[#allocation2 + $0x350] sm:$0xff]
    %v558 = vld [vmem:[#allocation2 + $0x358] sm:$0xff]
    %v559 = vld [vmem:[#allocation2 + $0x360] sm:$0xff]
    %v560 = vld [vmem:[#allocation2 + $0x368] sm:$0xff]
    %v561 = vld [vmem:[#allocation2 + $0x370] sm:$0xff]
    %v562 = vld [vmem:[#allocation2 + $0x378] sm:$0xff]
    %v563 = vld [vmem:[#allocation2 + $0x380] sm:$0xff]
    %v564 = vld [vmem:[#allocation2 + $0x388] sm:$0xff]
    %v565 = vld [vmem:[#allocation2 + $0x390] sm:$0xff]
    %v566 = vld [vmem:[#allocation2 + $0x398] sm:$0xff]
    %v567 = vld [vmem:[#allocation2 + $0x3a0] sm:$0xff]
    %v568 = vld [vmem:[#allocation2 + $0x3a8] sm:$0xff]
    %v569 = vld [vmem:[#allocation2 + $0x3b0] sm:$0xff]
    %v570 = vld [vmem:[#allocation2 + $0x3b8] sm:$0xff]
    %v571 = vld [vmem:[#allocation2 + $0x3c0] sm:$0xff]
    %v572 = vld [vmem:[#allocation2 + $0x3c8] sm:$0xff]
    %v573 = vld [vmem:[#allocation2 + $0x3d0] sm:$0xff]
    %v574 = vld [vmem:[#allocation2 + $0x3d8] sm:$0xff]
    %v575 = vld [vmem:[#allocation2 + $0x3e0] sm:$0xff]
    %v576 = vld [vmem:[#allocation2 + $0x3e8] sm:$0xff]
    %v577 = vld [vmem:[#allocation2 + $0x3f0] sm:$0xff]
    %v578 = vld [vmem:[#allocation2 + $0x3f8] sm:$0xff]
    %v579 = vunpack.c.l.bf16 %v515
    %v580 = vunpack.c.l.bf16 %v516
    %v581 = vunpack.c.l.bf16 %v517
    %v582 = vunpack.c.l.bf16 %v518
    %v583 = vunpack.c.h.bf16 %v515
    %v584 = vunpack.c.h.bf16 %v516
    %v585 = vunpack.c.h.bf16 %v517
    %v586 = vunpack.c.h.bf16 %v518
    %v587 = vunpack.c.l.bf16 %v519
    %v588 = vunpack.c.l.bf16 %v520
    %v589 = vunpack.c.l.bf16 %v521
    %v590 = vunpack.c.l.bf16 %v522
    %v591 = vunpack.c.h.bf16 %v519
    %v592 = vunpack.c.h.bf16 %v520
    %v593 = vunpack.c.h.bf16 %v521
    %v594 = vunpack.c.h.bf16 %v522
    %v595 = vunpack.c.l.bf16 %v523
    %v596 = vunpack.c.l.bf16 %v524
    %v597 = vunpack.c.l.bf16 %v525
    %v598 = vunpack.c.l.bf16 %v526
    %v599 = vunpack.c.h.bf16 %v523
    %v600 = vunpack.c.h.bf16 %v524
    %v601 = vunpack.c.h.bf16 %v525
    %v602 = vunpack.c.h.bf16 %v526
    %v603 = vunpack.c.l.bf16 %v527
    %v604 = vunpack.c.l.bf16 %v528
    %v605 = vunpack.c.l.bf16 %v529
    %v606 = vunpack.c.l.bf16 %v530
    %v607 = vunpack.c.h.bf16 %v527
    %v608 = vunpack.c.h.bf16 %v528
    %v609 = vunpack.c.h.bf16 %v529
    %v610 = vunpack.c.h.bf16 %v530
    %v611 = vunpack.c.l.bf16 %v531
    %v612 = vunpack.c.l.bf16 %v532
    %v613 = vunpack.c.l.bf16 %v533
    %v614 = vunpack.c.l.bf16 %v534
    %v615 = vunpack.c.h.bf16 %v531
    %v616 = vunpack.c.h.bf16 %v532
    %v617 = vunpack.c.h.bf16 %v533
    %v618 = vunpack.c.h.bf16 %v534
    %v619 = vunpack.c.l.bf16 %v535
    %v620 = vunpack.c.l.bf16 %v536
    %v621 = vunpack.c.l.bf16 %v537
    %v622 = vunpack.c.l.bf16 %v538
    %v623 = vunpack.c.h.bf16 %v535
    %v624 = vunpack.c.h.bf16 %v536
    %v625 = vunpack.c.h.bf16 %v537
    %v626 = vunpack.c.h.bf16 %v538
    %v627 = vunpack.c.l.bf16 %v539
    %v628 = vunpack.c.l.bf16 %v540
    %v629 = vunpack.c.l.bf16 %v541
    %v630 = vunpack.c.l.bf16 %v542
    %v631 = vunpack.c.h.bf16 %v539
    %v632 = vunpack.c.h.bf16 %v540
    %v633 = vunpack.c.h.bf16 %v541
    %v634 = vunpack.c.h.bf16 %v542
    %v635 = vunpack.c.l.bf16 %v543
    %v636 = vunpack.c.l.bf16 %v544
    %v637 = vunpack.c.l.bf16 %v545
    %v638 = vunpack.c.l.bf16 %v546
    %v639 = vunpack.c.h.bf16 %v543
    %v640 = vunpack.c.h.bf16 %v544
    %v641 = vunpack.c.h.bf16 %v545
    %v642 = vunpack.c.h.bf16 %v546
    %v643 = vunpack.c.l.bf16 %v547
    %v644 = vunpack.c.l.bf16 %v548
    %v645 = vunpack.c.l.bf16 %v549
    %v646 = vunpack.c.l.bf16 %v550
    %v647 = vunpack.c.h.bf16 %v547
    %v648 = vunpack.c.h.bf16 %v548
    %v649 = vunpack.c.h.bf16 %v549
    %v650 = vunpack.c.h.bf16 %v550
    %v651 = vunpack.c.l.bf16 %v551
    %v652 = vunpack.c.l.bf16 %v552
    %v653 = vunpack.c.l.bf16 %v553
    %v654 = vunpack.c.l.bf16 %v554
    %v655 = vunpack.c.h.bf16 %v551
    %v656 = vunpack.c.h.bf16 %v552
    %v657 = vunpack.c.h.bf16 %v553
    %v658 = vunpack.c.h.bf16 %v554
    %v659 = vunpack.c.l.bf16 %v555
    %v660 = vunpack.c.l.bf16 %v556
    %v661 = vunpack.c.l.bf16 %v557
    %v662 = vunpack.c.l.bf16 %v558
    %v663 = vunpack.c.h.bf16 %v555
    %v664 = vunpack.c.h.bf16 %v556
    %v665 = vunpack.c.h.bf16 %v557
    %v666 = vunpack.c.h.bf16 %v558
    %v667 = vunpack.c.l.bf16 %v559
    %v668 = vunpack.c.l.bf16 %v560
    %v669 = vunpack.c.l.bf16 %v561
    %v670 = vunpack.c.l.bf16 %v562
    %v671 = vunpack.c.h.bf16 %v559
    %v672 = vunpack.c.h.bf16 %v560
    %v673 = vunpack.c.h.bf16 %v561
    %v674 = vunpack.c.h.bf16 %v562
    %v675 = vunpack.c.l.bf16 %v563
    %v676 = vunpack.c.l.bf16 %v564
    %v677 = vunpack.c.l.bf16 %v565
    %v678 = vunpack.c.l.bf16 %v566
    %v679 = vunpack.c.h.bf16 %v563
    %v680 = vunpack.c.h.bf16 %v564
    %v681 = vunpack.c.h.bf16 %v565
    %v682 = vunpack.c.h.bf16 %v566
    %v683 = vunpack.c.l.bf16 %v567
    %v684 = vunpack.c.l.bf16 %v568
    %v685 = vunpack.c.l.bf16 %v569
    %v686 = vunpack.c.l.bf16 %v570
    %v687 = vunpack.c.h.bf16 %v567
    %v688 = vunpack.c.h.bf16 %v568
    %v689 = vunpack.c.h.bf16 %v569
    %v690 = vunpack.c.h.bf16 %v570
    %v691 = vunpack.c.l.bf16 %v571
    %v692 = vunpack.c.l.bf16 %v572
    %v693 = vunpack.c.l.bf16 %v573
    %v694 = vunpack.c.l.bf16 %v574
    %v695 = vunpack.c.h.bf16 %v571
    %v696 = vunpack.c.h.bf16 %v572
    %v697 = vunpack.c.h.bf16 %v573
    %v698 = vunpack.c.h.bf16 %v574
    %v699 = vunpack.c.l.bf16 %v575
    %v700 = vunpack.c.l.bf16 %v576
    %v701 = vunpack.c.l.bf16 %v577
    %v702 = vunpack.c.l.bf16 %v578
    %v703 = vunpack.c.h.bf16 %v575
    %v704 = vunpack.c.h.bf16 %v576
    %v705 = vunpack.c.h.bf16 %v577
    %v706 = vunpack.c.h.bf16 %v578
    %v707 = vlaneseq
    %v708 = vshrl.u32 %v707, 7
    %v709 = vsub.s32 1, %v708
    %v710 = vrot.slane %v147, %v709
    %v711 = vlaneseq
    %v712 = vshrl.u32 %v711, 7
    %v713 = vsub.s32 1, %v712
    %v714 = vrot.slane %v148, %v713
    %715 = vmatprep.subr.mxu0 %v580
    %716 = vmatpush1.xpose.msra.mxu0 %v579
    %717 = vmatprep.subr.mxu0 %v584
    %718 = vmatpush1.xpose.msra.mxu0 %v583
    %719 = vmatprep.subr.mxu0 %v588
    %720 = vmatpush1.xpose.msra.mxu0 %v587
    %721 = vmatprep.subr.mxu0 %v592
    %722 = vmatpush1.xpose.msra.mxu0 %v591
    %723 = vmatprep.subr.mxu0 %v596
    %724 = vmatpush1.xpose.msra.mxu0 %v595
    %725 = vmatprep.subr.mxu0 %v600
    %726 = vmatpush1.xpose.msra.mxu0 %v599
    %727 = vmatprep.subr.mxu0 %v604
    %728 = vmatpush1.xpose.msra.mxu0 %v603
    %729 = vmatprep.subr.mxu0 %v608
    %730 = vmatpush1.xpose.msra.mxu0 %v607
    %731 = vmatprep.subr.mxu0 %v612
    %732 = vmatpush1.xpose.msra.mxu0 %v611
    %733 = vmatprep.subr.mxu0 %v616
    %734 = vmatpush1.xpose.msra.mxu0 %v615
    %735 = vmatprep.subr.mxu0 %v620
    %736 = vmatpush1.xpose.msra.mxu0 %v619
    %737 = vmatprep.subr.mxu0 %v624
    %738 = vmatpush1.xpose.msra.mxu0 %v623
    %739 = vmatprep.subr.mxu0 %v628
    %740 = vmatpush1.xpose.msra.mxu0 %v627
    %741 = vmatprep.subr.mxu0 %v632
    %742 = vmatpush1.xpose.msra.mxu0 %v631
    %743 = vmatprep.subr.mxu0 %v636
    %744 = vmatpush1.xpose.msra.mxu0 %v635
    %745 = vmatprep.subr.mxu0 %v640
    %746 = vmatpush1.xpose.msra.mxu0 %v639
    %747 = vmatprep.subr.mxu0 %v644
    %748 = vmatpush1.xpose.msra.mxu0 %v643
    %749 = vmatprep.subr.mxu0 %v648
    %750 = vmatpush1.xpose.msra.mxu0 %v647
    %751 = vmatprep.subr.mxu0 %v652
    %752 = vmatpush1.xpose.msra.mxu0 %v651
    %753 = vmatprep.subr.mxu0 %v656
    %754 = vmatpush1.xpose.msra.mxu0 %v655
    %755 = vmatprep.subr.mxu0 %v660
    %756 = vmatpush1.xpose.msra.mxu0 %v659
    %757 = vmatprep.subr.mxu0 %v664
    %758 = vmatpush1.xpose.msra.mxu0 %v663
    %759 = vmatprep.subr.mxu0 %v668
    %760 = vmatpush1.xpose.msra.mxu0 %v667
    %761 = vmatprep.subr.mxu0 %v672
    %762 = vmatpush1.xpose.msra.mxu0 %v671
    %763 = vmatprep.subr.mxu0 %v676
    %764 = vmatpush1.xpose.msra.mxu0 %v675
    %765 = vmatprep.subr.mxu0 %v680
    %766 = vmatpush1.xpose.msra.mxu0 %v679
    %767 = vmatprep.subr.mxu0 %v684
    %768 = vmatpush1.xpose.msra.mxu0 %v683
    %769 = vmatprep.subr.mxu0 %v688
    %770 = vmatpush1.xpose.msra.mxu0 %v687
    %771 = vmatprep.subr.mxu0 %v692
    %772 = vmatpush1.xpose.msra.mxu0 %v691
    %773 = vmatprep.subr.mxu0 %v696
    %774 = vmatpush1.xpose.msra.mxu0 %v695
    %775 = vmatprep.subr.mxu0 %v700
    %776 = vmatpush1.xpose.msra.mxu0 %v699
    %777 = vmatprep.subr.mxu0 %v704
    %778 = vmatpush1.xpose.msra.mxu0 %v703
    %779 = vmatprep.mubr.f32.mxu0 %v510
    %780 = vmatmul.mubr.f32.gmra.mrb[0].mxu0 %v509
    %v781 = vpop.f32.mrb[0].mxu0
    %v782 = vadd.f32 %v710, %v781
    %v783 = vpop.f32.mrb[0].mxu0
    %v784 = vadd.f32 %v714, %v783
    %785 = vdwg.mxu0
    %786 = vmatprep.subr.mxu0 %v582
    %787 = vmatpush1.xpose.msra.mxu0 %v581
    %788 = vmatprep.subr.mxu0 %v586
    %789 = vmatpush1.xpose.msra.mxu0 %v585
    %790 = vmatprep.subr.mxu0 %v590
    %791 = vmatpush1.xpose.msra.mxu0 %v589
    %792 = vmatprep.subr.mxu0 %v594
    %793 = vmatpush1.xpose.msra.mxu0 %v593
    %794 = vmatprep.subr.mxu0 %v598
    %795 = vmatpush1.xpose.msra.mxu0 %v597
    %796 = vmatprep.subr.mxu0 %v602
    %797 = vmatpush1.xpose.msra.mxu0 %v601
    %798 = vmatprep.subr.mxu0 %v606
    %799 = vmatpush1.xpose.msra.mxu0 %v605
    %800 = vmatprep.subr.mxu0 %v610
    %801 = vmatpush1.xpose.msra.mxu0 %v609
    %802 = vmatprep.subr.mxu0 %v614
    %803 = vmatpush1.xpose.msra.mxu0 %v613
    %804 = vmatprep.subr.mxu0 %v618
    %805 = vmatpush1.xpose.msra.mxu0 %v617
    %806 = vmatprep.subr.mxu0 %v622
    %807 = vmatpush1.xpose.msra.mxu0 %v621
    %808 = vmatprep.subr.mxu0 %v626
    %809 = vmatpush1.xpose.msra.mxu0 %v625
    %810 = vmatprep.subr.mxu0 %v630
    %811 = vmatpush1.xpose.msra.mxu0 %v629
    %812 = vmatprep.subr.mxu0 %v634
    %813 = vmatpush1.xpose.msra.mxu0 %v633
    %814 = vmatprep.subr.mxu0 %v638
    %815 = vmatpush1.xpose.msra.mxu0 %v637
    %816 = vmatprep.subr.mxu0 %v642
    %817 = vmatpush1.xpose.msra.mxu0 %v641
    %818 = vmatprep.subr.mxu0 %v646
    %819 = vmatpush1.xpose.msra.mxu0 %v645
    %820 = vmatprep.subr.mxu0 %v650
    %821 = vmatpush1.xpose.msra.mxu0 %v649
    %822 = vmatprep.subr.mxu0 %v654
    %823 = vmatpush1.xpose.msra.mxu0 %v653
    %824 = vmatprep.subr.mxu0 %v658
    %825 = vmatpush1.xpose.msra.mxu0 %v657
    %826 = vmatprep.subr.mxu0 %v662
    %827 = vmatpush1.xpose.msra.mxu0 %v661
    %828 = vmatprep.subr.mxu0 %v666
    %829 = vmatpush1.xpose.msra.mxu0 %v665
    %830 = vmatprep.subr.mxu0 %v670
    %831 = vmatpush1.xpose.msra.mxu0 %v669
    %832 = vmatprep.subr.mxu0 %v674
    %833 = vmatpush1.xpose.msra.mxu0 %v673
    %834 = vmatprep.subr.mxu0 %v678
    %835 = vmatpush1.xpose.msra.mxu0 %v677
    %836 = vmatprep.subr.mxu0 %v682
    %837 = vmatpush1.xpose.msra.mxu0 %v681
    %838 = vmatprep.subr.mxu0 %v686
    %839 = vmatpush1.xpose.msra.mxu0 %v685
    %840 = vmatprep.subr.mxu0 %v690
    %841 = vmatpush1.xpose.msra.mxu0 %v689
    %842 = vmatprep.subr.mxu0 %v694
    %843 = vmatpush1.xpose.msra.mxu0 %v693
    %844 = vmatprep.subr.mxu0 %v698
    %845 = vmatpush1.xpose.msra.mxu0 %v697
    %846 = vmatprep.subr.mxu0 %v702
    %847 = vmatpush1.xpose.msra.mxu0 %v701
    %848 = vmatprep.subr.mxu0 %v706
    %849 = vmatpush1.xpose.msra.mxu0 %v705
    %850 = vmatprep.mubr.f32.mxu0 %v512
    %851 = vmatmul.mubr.f32.gmra.mrb[0].mxu0 %v511
    %v852 = vpop.f32.mrb[0].mxu0
    %v853 = vadd.f32 %v782, %v852
    %v854 = vpop.f32.mrb[0].mxu0
    %v855 = vadd.f32 %v784, %v854
    %856 = vdwg.mxu0
    %v857 = vmul.f32 %v853, 0.2
    %v858 = vmul.f32 %v855, 0.2
    %v859 = vmax.f32 %v853, %v857
    %v860 = vmax.f32 %v855, %v858
    %s861 = smul.u32 4, 8
    %s862 = smul.u32 %s861, 4
    %s863 = sshll.u32 %s862, 4
    %864 = dma.done %s110, %s863
    %v865 = vld [vmem:[#allocation2 + $0x400] sm:$0xff]
    %v866 = vld [vmem:[#allocation2 + $0x408] sm:$0xff]
    %v867 = vld [vmem:[#allocation2 + $0x420] sm:$0xff]
    %v868 = vld [vmem:[#allocation2 + $0x428] sm:$0xff]
    %v869 = vld [vmem:[#allocation2 + $0x440] sm:$0xff]
    %v870 = vld [vmem:[#allocation2 + $0x448] sm:$0xff]
    %v871 = vld [vmem:[#allocation2 + $0x460] sm:$0xff]
    %v872 = vld [vmem:[#allocation2 + $0x468] sm:$0xff]
    %v873 = vunpack.c.l.bf16 %v865
    %v874 = vunpack.c.l.bf16 %v866
    %v875 = vunpack.c.h.bf16 %v865
    %v876 = vunpack.c.h.bf16 %v866
    %v877 = vunpack.c.l.bf16 %v867
    %v878 = vunpack.c.l.bf16 %v868
    %v879 = vunpack.c.h.bf16 %v867
    %v880 = vunpack.c.h.bf16 %v868
    %v881 = vunpack.c.l.bf16 %v869
    %v882 = vunpack.c.l.bf16 %v870
    %v883 = vunpack.c.h.bf16 %v869
    %v884 = vunpack.c.h.bf16 %v870
    %v885 = vunpack.c.l.bf16 %v871
    %v886 = vunpack.c.l.bf16 %v872
    %v887 = vunpack.c.h.bf16 %v871
    %v888 = vunpack.c.h.bf16 %v872
    %v889 = vlaneseq
    %v890 = vshrl.u32 %v889, 7
    %v891 = vsub.s32 2, %v890
    %v892 = vrot.slane %v147, %v891
    %893 = vmatprep.subr.mxu0 %v874
    %894 = vmatpush1.xpose.msra.mxu0 %v873
    %895 = vmatprep.subr.mxu0 %v876
    %896 = vmatpush1.xpose.msra.mxu0 %v875
    %897 = vmatprep.subr.mxu0 %v878
    %898 = vmatpush1.xpose.msra.mxu0 %v877
    %899 = vmatprep.subr.mxu0 %v880
    %900 = vmatpush1.xpose.msra.mxu0 %v879
    %901 = vmatprep.subr.mxu0 %v882
    %902 = vmatpush1.xpose.msra.mxu0 %v881
    %903 = vmatprep.subr.mxu0 %v884
    %904 = vmatpush1.xpose.msra.mxu0 %v883
    %905 = vmatprep.subr.mxu0 %v886
    %906 = vmatpush1.xpose.msra.mxu0 %v885
    %907 = vmatprep.subr.mxu0 %v888
    %908 = vmatpush1.xpose.msra.mxu0 %v887
    %909 = vmatprep.subr.mxu0 0.0
    %910 = vmatpush1.xpose.msra.mxu0 0.0
    %911 = vmatprep.subr.mxu0 0.0
    %912 = vmatpush1.xpose.msra.mxu0 0.0
    %913 = vmatprep.subr.mxu0 0.0
    %914 = vmatpush1.xpose.msra.mxu0 0.0
    %915 = vmatprep.subr.mxu0 0.0
    %916 = vmatpush1.xpose.msra.mxu0 0.0
    %917 = vmatprep.subr.mxu0 0.0
    %918 = vmatpush1.xpose.msra.mxu0 0.0
    %919 = vmatprep.subr.mxu0 0.0
    %920 = vmatpush1.xpose.msra.mxu0 0.0
    %921 = vmatprep.subr.mxu0 0.0
    %922 = vmatpush1.xpose.msra.mxu0 0.0
    %923 = vmatprep.subr.mxu0 0.0
    %924 = vmatpush1.xpose.msra.mxu0 0.0
    %925 = vmatprep.subr.mxu0 0.0
    %926 = vmatpush1.xpose.msra.mxu0 0.0
    %927 = vmatprep.subr.mxu0 0.0
    %928 = vmatpush1.xpose.msra.mxu0 0.0
    %929 = vmatprep.subr.mxu0 0.0
    %930 = vmatpush1.xpose.msra.mxu0 0.0
    %931 = vmatprep.subr.mxu0 0.0
    %932 = vmatpush1.xpose.msra.mxu0 0.0
    %933 = vmatprep.subr.mxu0 0.0
    %934 = vmatpush1.xpose.msra.mxu0 0.0
    %935 = vmatprep.subr.mxu0 0.0
    %936 = vmatpush1.xpose.msra.mxu0 0.0
    %937 = vmatprep.subr.mxu0 0.0
    %938 = vmatpush1.xpose.msra.mxu0 0.0
    %939 = vmatprep.subr.mxu0 0.0
    %940 = vmatpush1.xpose.msra.mxu0 0.0
    %941 = vmatprep.subr.mxu0 0.0
    %942 = vmatpush1.xpose.msra.mxu0 0.0
    %943 = vmatprep.subr.mxu0 0.0
    %944 = vmatpush1.xpose.msra.mxu0 0.0
    %945 = vmatprep.subr.mxu0 0.0
    %946 = vmatpush1.xpose.msra.mxu0 0.0
    %947 = vmatprep.subr.mxu0 0.0
    %948 = vmatpush1.xpose.msra.mxu0 0.0
    %949 = vmatprep.subr.mxu0 0.0
    %950 = vmatpush1.xpose.msra.mxu0 0.0
    %951 = vmatprep.subr.mxu0 0.0
    %952 = vmatpush1.xpose.msra.mxu0 0.0
    %953 = vmatprep.subr.mxu0 0.0
    %954 = vmatpush1.xpose.msra.mxu0 0.0
    %955 = vmatprep.subr.mxu0 0.0
    %956 = vmatpush1.xpose.msra.mxu0 0.0
    %957 = vmatprep.mubr.f32.mxu0 %v860
    %958 = vmatmul.mubr.f32.gmra.mrb[0].mxu0 %v859
    %v959 = vpop.f32.mrb[0].mxu0
    %v960 = vadd.f32 %v892, %v959
    %v961 = vpop.f32.mrb[0].mxu0
    %962 = vdwg.mxu0
    %v963 = vmul.f32 %v960, 0.2
    %v964 = vmax.f32 %v960, %v963
    %v965 = vlaneseq
    %v966 = vshrl.u32 %v965, 7
    %v967 = vsub.s32 4, %v966
    %v968 = vrot.slane %v147, %v967
    %v969 = vmul.f32 %v964, %v968
    %vm970 = vcmask 523264
    %v971 = vsel %vm970, %v969, 0.0
    %972 = vadd.xlane.f32.xlu0 %v971
    %v973 = vpop.xlane.xlu0 %972
    %v974 = vlaneseq
    %v975 = vshrl.u32 %v974, 7
    %v976 = vsub.s32 3, %v975
    %v977 = vrot.slane %v147, %v976
    %v978 = vadd.f32 %v973, %v977
    %vm979 = vcmask 7168
    %980 = vst.msk [vmem:[%s3] sm:$0xff] %vm979, %v978
    // Predicated region
    $region18: #{tpu_custom_call.1} parent=1 // pred_check
      _
    $region19: #{tpu_custom_call.1} parent=1 // pred_check_branch
      %982 = sbr.rel (0) target = $region21
    $region20: #{tpu_custom_call.1} parent=1 // pred_region
      _
    $region21: #{tpu_custom_call.1} parent=1 // pred_fallthru
      _
    // Predicated region
    $region22: #{tpu_custom_call.1} parent=1 // pred_check
      _
    $region23: #{tpu_custom_call.1} parent=1 // pred_check_branch
      %984 = sbr.rel (0) target = $region25
    $region24: #{tpu_custom_call.1} parent=1 // pred_region
      _
    $region25: #{tpu_custom_call.1} parent=1 // pred_fallthru
      _
    %985 = vsyncpa [#allocation5], 1
    %986 = vsyncpa [#allocation7], 1
  %987 = vsyncmov [#allocation3]
  %s988 = vpop.sfrf %987
  %p989 = scmp.eq.s32.totalorder %s988, 0
  %p990 = pneg %p989
  %992 = shalt.err (%p990)
  %s993 = scalar_lea.sflag [#allocation3], 1
  %994 = vsyncmov %s993
  %s995 = vpop.sfrf %994
  %p996 = scmp.eq.s32.totalorder %s995, 0
  %p997 = pneg %p996
  %999 = shalt.err (%p997)
  %s1000 = scalar_lea.sflag [#allocation3], 2
  %1001 = vsyncmov %s1000
  %s1002 = vpop.sfrf %1001
  %p1003 = scmp.eq.s32.totalorder %s1002, 0
  %p1004 = pneg %p1003
  %1006 = shalt.err (%p1004)

</llo_original>
